<compile_context>
chip_gen: v7x
topology: tpu7x:2x2x1
jax: 0.10.0
libtpu: 0.0.40
codegen_flags: <defaults>
</compile_context>

<pallas_src>
import functools

import jax
import jax.numpy as jnp
from jax import lax
from jax.experimental import pallas as pl
from jax.experimental.pallas import tpu as pltpu
import numpy as np


def _pick_row_chunk(npg):
    """Rows per inner MAC step (static). Prefer a multiple-of-8 divisor of npg
    (no overlapping tail chunk); else min(npg, 64) with an overlapping tail."""
    cap = min(npg, 64)
    for c in range(cap - cap % 8, 7, -8):
        if npg % c == 0:
            return c
    return cap


def _choose_graphs_per_block(B, npg, node_bytes, target_bytes):
    """Whole subgraphs per grid step. Must divide B (so no input padding copy)
    and give an 8-sublane-aligned node block."""
    divisors = [d for d in range(1, B + 1) if B % d == 0]
    valid = [d for d in divisors if (d * npg) % 8 == 0]
    if not valid:
        # TODO(synk): no divisor of B gives an 8-aligned node block; fall back
        # to a single whole-array block (legal since block == full array dim),
        # which is only VMEM-heavy for very large inputs.
        return B
    fitting = [d for d in valid if d * npg * node_bytes <= target_bytes]
    pool = fitting if fitting else valid[:1]
    pref = [d for d in pool if B // d >= 4]   # keep >=4 grid steps (megacore balance)
    return max(pref if pref else pool)


def _agg_kernel(lengths_ref, med_ref, x_ref, o_ref, *,
                npg, gpb, t_max, f, row_chunk, chunk_starts):
    """One grid step == `gpb` whole subgraphs (gpb * npg nodes).

    lengths_ref : SMEM (B,)    int32   -- scalar-prefetched per-graph lengths
    med_ref     : VMEM (npg,T) float32 -- resident (constant block index)
    x_ref       : VMEM (gpb*npg, T*F)  -- flattened (T,F): lane-dense rows
    o_ref       : VMEM (gpb*npg, F)
    """
    blk = pl.program_id(0)

    def graph_body(g, carry):
        length = lengths_ref[blk * gpb + g]          # scalar SMEM read
        base = g * npg
        for r0 in chunk_starts:                      # static python loop
            start = base + r0
            if npg % 8 == 0 and r0 % 8 == 0:
                start = pl.multiple_of(start, 8)
            rows = pl.ds(start, row_chunk)
            xc = x_ref[rows, :]                      # one wide (rc, T*F) load
            wc = med_ref[r0:r0 + row_chunk, :]       # (rc, T) f32, static slice
            acc = jnp.zeros((row_chunk, f), jnp.float32)
            for t in range(t_max):                   # short static T loop
                p = wc[:, t:t + 1] * xc[:, t * f:(t + 1) * f].astype(jnp.float32)
                # Scalar select (uniform within a subgraph): exact slice
                # semantics; NaN/Inf in padded timesteps cannot leak in.
                acc = acc + jnp.where(t < length, p, 0.0)
            o_ref[rows, :] = acc.astype(o_ref.dtype)
        return carry

    lax.fori_loop(0, gpb, graph_body, 0, unroll=min(2, gpb))


def aggregate_nodes_temporal_feature(lengths, nodes_output, med_level,
                                     nodes_per_graph, *,
                                     target_block_bytes=3 * 1024 * 1024):
    """JAX/Pallas wrapper.

    lengths      : (B,) int
    nodes_output : (B * nodes_per_graph, T_max, F) float32 or bfloat16
    med_level    : (nodes_per_graph, T_max)
    returns      : (B * nodes_per_graph, F) in nodes_output.dtype
    """
    B = int(lengths.shape[0])
    n_total, t_max, f = nodes_output.shape
    npg = int(nodes_per_graph)
    assert n_total == B * npg
    # TODO(synk): graph.batch_num_nodes() is assumed uniform (== med_level rows);
    # ragged subgraphs would need per-graph node offsets in the index_map.

    x2 = nodes_output.reshape(n_total, t_max * f)     # free: contiguous reshape
    med = med_level.astype(jnp.float32)
    lens32 = lengths.astype(jnp.int32)

    itemsize = jnp.dtype(nodes_output.dtype).itemsize
    node_bytes = t_max * f * itemsize
    gpb = _choose_graphs_per_block(B, npg, node_bytes, target_block_bytes)
    block_n = gpb * npg
    grid = (B // gpb,)

    row_chunk = _pick_row_chunk(npg)
    n_chunks = -(-npg // row_chunk)
    chunk_starts = tuple(sorted({min(c * row_chunk, npg - row_chunk)
                                 for c in range(n_chunks)}))

    out_dtype = nodes_output.dtype
    cost = pl.CostEstimate(
        flops=2 * n_total * t_max * f,
        transcendentals=0,
        bytes_accessed=(n_total * t_max * f * itemsize   # x
                        + n_total * f * itemsize         # out
                        + npg * t_max * 4 + B * 4))      # resident med + lengths

    # VMEM: double-buffered x + out blocks, lane-padded resident med, slack.
    x_blk = block_n * t_max * f * itemsize
    o_blk = block_n * f * itemsize
    med_blk = ((npg + 7) // 8) * 8 * 128 * 4
    vmem_limit = max(32 * 1024 * 1024,
                     int(2.5 * (x_blk + o_blk) + med_blk + (1 << 20)))
    vmem_limit = min(vmem_limit, 100 * 1024 * 1024)

    out = pl.pallas_call(
        functools.partial(_agg_kernel, npg=npg, gpb=gpb, t_max=t_max, f=f,
                          row_chunk=row_chunk, chunk_starts=chunk_starts),
        out_shape=jax.ShapeDtypeStruct((n_total, f), out_dtype),
        grid_spec=pltpu.PrefetchScalarGridSpec(
            num_scalar_prefetch=1,
            grid=grid,
            in_specs=[
                pl.BlockSpec((npg, t_max), lambda i, lens: (0, 0)),       # resident
                pl.BlockSpec((block_n, t_max * f), lambda i, lens: (i, 0)),
            ],
            out_specs=pl.BlockSpec((block_n, f), lambda i, lens: (i, 0)),
        ),
        compiler_params=pltpu.CompilerParams(
            dimension_semantics=("parallel",),
            vmem_limit_bytes=vmem_limit),
        cost_estimate=cost,
    )(lens32, med, x2)

    return out


def _reference(lengths, nodes_output, med_level, npg):
    """Pure-JAX port of the PyTorch loop (f32 accumulation, true slicing)."""
    outs = []
    idx = 0
    for b in range(int(lengths.shape[0])):
        L = int(lengths[b])
        xb = nodes_output[idx:idx + npg, :L, :].astype(jnp.float32)
        wgt = med_level[:, None, :L].astype(jnp.float32)      # (npg, 1, L)
        outs.append(jnp.matmul(wgt, xb)[:, 0, :])             # (npg, F)
        idx += npg
    return jnp.concatenate(outs, axis=0)


if __name__ == "__main__":
    # small deterministic shapes
    B = 4                 # batch of subgraphs
    NPG = 96              # nodes per subgraph
    T_MAX = 8             # time steps
    F = 32                # item_embed_dim

    key = jax.random.PRNGKey(0)
    k1, k2, k3 = jax.random.split(key, 3)

    nodes_output = jax.random.normal(k1, (B * NPG, T_MAX, F), dtype=jnp.float32)
    med_level = jax.random.normal(k2, (NPG, T_MAX), dtype=jnp.float32)
    lengths = jnp.array([T_MAX, 5, T_MAX, 3], dtype=jnp.int32)

    # Poison padded timesteps (t >= length) with NaN: the PyTorch forward
    # slices them away, and the kernel's scalar select must do the same.
    graph_of_node = jnp.arange(B * NPG, dtype=jnp.int32) // NPG
    pad_mask = jnp.arange(T_MAX)[None, :] >= lengths[graph_of_node][:, None]
    nodes_output = jnp.where(pad_mask[:, :, None], jnp.nan, nodes_output)

    # Unused-in-forward parameter of the module (nn.Linear(F, 1, bias=False)).
    Wq_weight = jax.random.normal(k3, (1, F), dtype=jnp.float32) / jnp.sqrt(F)
    _ = Wq_weight  # TODO(synk): Wq is declared in the module but never used in forward().

    # f32 path (multi-step grid: 4 subgraph blocks, resident med_level).
    out_f32 = aggregate_nodes_temporal_feature(lengths, nodes_output, med_level, NPG)
    out_f32 = jax.block_until_ready(out_f32)
    ref_f32 = _reference(lengths, nodes_output, med_level, NPG)
    np.testing.assert_allclose(np.asarray(out_f32), np.asarray(ref_f32),
                               rtol=1e-5, atol=1e-5)
    assert np.isfinite(np.asarray(out_f32)).all()

    # bf16 storage path (f32 accumulation in-kernel).
    x_bf16 = nodes_output.astype(jnp.bfloat16)
    out_bf16 = aggregate_nodes_temporal_feature(lengths, x_bf16, med_level, NPG)
    out_bf16 = jax.block_until_ready(out_bf16)
    ref_bf16 = _reference(lengths, x_bf16.astype(jnp.float32), med_level, NPG)
    np.testing.assert_allclose(np.asarray(out_bf16.astype(jnp.float32)),
                               np.asarray(ref_bf16), rtol=2e-2, atol=2e-2)

    print("KERNEL_OK")
</pallas_src>

<mosaic_0001>
module attributes {stable_mosaic.version = 11 : i64} {
  func.func @_agg_kernel(%arg0: i32, %arg1: memref<4xi32, #tpu.memory_space<smem>>, %arg2: memref<96x8xf32, #tpu.memory_space<vmem>>, %arg3: memref<96x256xf32, #tpu.memory_space<vmem>>, %arg4: memref<96x32xf32, #tpu.memory_space<vmem>>) attributes {dimension_semantics = [#tpu.dimension_semantics<parallel>], iteration_bounds = array<i64: 4>, scalar_prefetch = 1 : i64, scratch_operands = 0 : i64, tpu.core_type = #tpu.core_type<tc>, window_params = [{pipeline_mode = #tpu.pipeline_mode<synchronous>, transform_indices = @transform_0, window_bounds = array<i64: 96, 8>}, {transform_indices = @transform_1, window_bounds = array<i64: 96, 256>}, {transform_indices = @transform_2, window_bounds = array<i64: 96, 32>}]} {
    %c0_i32 = arith.constant 0 : i32
    %c1_i32 = arith.constant 1 : i32
    %0 = arith.muli %arg0, %c1_i32 : i32
    %1 = arith.addi %0, %c0_i32 : i32
    %2 = arith.index_cast %1 : i32 to index
    %3 = memref.load %arg1[%2] : memref<4xi32, #tpu.memory_space<smem>>
    %c96_i32 = arith.constant 96 : i32
    %4 = arith.muli %c0_i32, %c96_i32 : i32
    %c0_i32_0 = arith.constant 0 : i32
    %5 = arith.addi %4, %c0_i32_0 : i32
    %6 = tpu.assume_multiple %5, 8 : i32
    %7 = arith.index_cast %6 : i32 to index
    %c0 = arith.constant 0 : index
    %8 = vector.load %arg3[%7, %c0] : memref<96x256xf32, #tpu.memory_space<vmem>>, vector<48x256xf32>
    %c0_1 = arith.constant 0 : index
    %c0_2 = arith.constant 0 : index
    %9 = vector.load %arg2[%c0_1, %c0_2] : memref<96x8xf32, #tpu.memory_space<vmem>>, vector<48x8xf32>
    %cst = arith.constant 0.000000e+00 : f32
    %10 = vector.broadcast %cst : f32 to vector<48x32xf32>
    %11 = vector.extract_strided_slice %9 {offsets = [0, 0], sizes = [48, 1], strides = [1, 1]} : vector<48x8xf32> to vector<48x1xf32>
    %12 = vector.extract_strided_slice %8 {offsets = [0, 0], sizes = [48, 32], strides = [1, 1]} : vector<48x256xf32> to vector<48x32xf32>
    %13 = vector.broadcast %11 : vector<48x1xf32> to vector<48x32xf32>
    %14 = arith.mulf %13, %12 : vector<48x32xf32>
    %c0_i32_3 = arith.constant 0 : i32
    %15 = arith.cmpi sgt, %3, %c0_i32_3 : i32
    %cst_4 = arith.constant 0.000000e+00 : f32
    %16 = vector.broadcast %cst_4 : f32 to vector<48x32xf32>
    %17 = arith.select %15, %14, %16 : vector<48x32xf32>
    %18 = arith.addf %10, %17 : vector<48x32xf32>
    %19 = vector.extract_strided_slice %9 {offsets = [0, 1], sizes = [48, 1], strides = [1, 1]} : vector<48x8xf32> to vector<48x1xf32>
    %20 = vector.extract_strided_slice %8 {offsets = [0, 32], sizes = [48, 32], strides = [1, 1]} : vector<48x256xf32> to vector<48x32xf32>
    %21 = vector.broadcast %19 : vector<48x1xf32> to vector<48x32xf32>
    %22 = arith.mulf %21, %20 : vector<48x32xf32>
    %c1_i32_5 = arith.constant 1 : i32
    %23 = arith.cmpi sgt, %3, %c1_i32_5 : i32
    %cst_6 = arith.constant 0.000000e+00 : f32
    %24 = vector.broadcast %cst_6 : f32 to vector<48x32xf32>
    %25 = arith.select %23, %22, %24 : vector<48x32xf32>
    %26 = arith.addf %18, %25 : vector<48x32xf32>
    %27 = vector.extract_strided_slice %9 {offsets = [0, 2], sizes = [48, 1], strides = [1, 1]} : vector<48x8xf32> to vector<48x1xf32>
    %28 = vector.extract_strided_slice %8 {offsets = [0, 64], sizes = [48, 32], strides = [1, 1]} : vector<48x256xf32> to vector<48x32xf32>
    %29 = vector.broadcast %27 : vector<48x1xf32> to vector<48x32xf32>
    %30 = arith.mulf %29, %28 : vector<48x32xf32>
    %c2_i32 = arith.constant 2 : i32
    %31 = arith.cmpi sgt, %3, %c2_i32 : i32
    %cst_7 = arith.constant 0.000000e+00 : f32
    %32 = vector.broadcast %cst_7 : f32 to vector<48x32xf32>
    %33 = arith.select %31, %30, %32 : vector<48x32xf32>
    %34 = arith.addf %26, %33 : vector<48x32xf32>
    %35 = vector.extract_strided_slice %9 {offsets = [0, 3], sizes = [48, 1], strides = [1, 1]} : vector<48x8xf32> to vector<48x1xf32>
    %36 = vector.extract_strided_slice %8 {offsets = [0, 96], sizes = [48, 32], strides = [1, 1]} : vector<48x256xf32> to vector<48x32xf32>
    %37 = vector.broadcast %35 : vector<48x1xf32> to vector<48x32xf32>
    %38 = arith.mulf %37, %36 : vector<48x32xf32>
    %c3_i32 = arith.constant 3 : i32
    %39 = arith.cmpi sgt, %3, %c3_i32 : i32
    %cst_8 = arith.constant 0.000000e+00 : f32
    %40 = vector.broadcast %cst_8 : f32 to vector<48x32xf32>
    %41 = arith.select %39, %38, %40 : vector<48x32xf32>
    %42 = arith.addf %34, %41 : vector<48x32xf32>
    %43 = vector.extract_strided_slice %9 {offsets = [0, 4], sizes = [48, 1], strides = [1, 1]} : vector<48x8xf32> to vector<48x1xf32>
    %44 = vector.extract_strided_slice %8 {offsets = [0, 128], sizes = [48, 32], strides = [1, 1]} : vector<48x256xf32> to vector<48x32xf32>
    %45 = vector.broadcast %43 : vector<48x1xf32> to vector<48x32xf32>
    %46 = arith.mulf %45, %44 : vector<48x32xf32>
    %c4_i32 = arith.constant 4 : i32
    %47 = arith.cmpi sgt, %3, %c4_i32 : i32
    %cst_9 = arith.constant 0.000000e+00 : f32
    %48 = vector.broadcast %cst_9 : f32 to vector<48x32xf32>
    %49 = arith.select %47, %46, %48 : vector<48x32xf32>
    %50 = arith.addf %42, %49 : vector<48x32xf32>
    %51 = vector.extract_strided_slice %9 {offsets = [0, 5], sizes = [48, 1], strides = [1, 1]} : vector<48x8xf32> to vector<48x1xf32>
    %52 = vector.extract_strided_slice %8 {offsets = [0, 160], sizes = [48, 32], strides = [1, 1]} : vector<48x256xf32> to vector<48x32xf32>
    %53 = vector.broadcast %51 : vector<48x1xf32> to vector<48x32xf32>
    %54 = arith.mulf %53, %52 : vector<48x32xf32>
    %c5_i32 = arith.constant 5 : i32
    %55 = arith.cmpi sgt, %3, %c5_i32 : i32
    %cst_10 = arith.constant 0.000000e+00 : f32
    %56 = vector.broadcast %cst_10 : f32 to vector<48x32xf32>
    %57 = arith.select %55, %54, %56 : vector<48x32xf32>
    %58 = arith.addf %50, %57 : vector<48x32xf32>
    %59 = vector.extract_strided_slice %9 {offsets = [0, 6], sizes = [48, 1], strides = [1, 1]} : vector<48x8xf32> to vector<48x1xf32>
    %60 = vector.extract_strided_slice %8 {offsets = [0, 192], sizes = [48, 32], strides = [1, 1]} : vector<48x256xf32> to vector<48x32xf32>
    %61 = vector.broadcast %59 : vector<48x1xf32> to vector<48x32xf32>
    %62 = arith.mulf %61, %60 : vector<48x32xf32>
    %c6_i32 = arith.constant 6 : i32
    %63 = arith.cmpi sgt, %3, %c6_i32 : i32
    %cst_11 = arith.constant 0.000000e+00 : f32
    %64 = vector.broadcast %cst_11 : f32 to vector<48x32xf32>
    %65 = arith.select %63, %62, %64 : vector<48x32xf32>
    %66 = arith.addf %58, %65 : vector<48x32xf32>
    %67 = vector.extract_strided_slice %9 {offsets = [0, 7], sizes = [48, 1], strides = [1, 1]} : vector<48x8xf32> to vector<48x1xf32>
    %68 = vector.extract_strided_slice %8 {offsets = [0, 224], sizes = [48, 32], strides = [1, 1]} : vector<48x256xf32> to vector<48x32xf32>
    %69 = vector.broadcast %67 : vector<48x1xf32> to vector<48x32xf32>
    %70 = arith.mulf %69, %68 : vector<48x32xf32>
    %c7_i32 = arith.constant 7 : i32
    %71 = arith.cmpi sgt, %3, %c7_i32 : i32
    %cst_12 = arith.constant 0.000000e+00 : f32
    %72 = vector.broadcast %cst_12 : f32 to vector<48x32xf32>
    %73 = arith.select %71, %70, %72 : vector<48x32xf32>
    %74 = arith.addf %66, %73 : vector<48x32xf32>
    %75 = arith.index_cast %6 : i32 to index
    %c0_13 = arith.constant 0 : index
    %76 = vector.load %arg4[%75, %c0_13] : memref<96x32xf32, #tpu.memory_space<vmem>>, vector<48x32xf32>
    tpu.vector_store %arg4[%75, %c0_13], %74 {strides = array<i32>} : memref<96x32xf32, #tpu.memory_space<vmem>>, vector<48x32xf32>,
    %c48_i32 = arith.constant 48 : i32
    %77 = arith.addi %4, %c48_i32 : i32
    %78 = tpu.assume_multiple %77, 8 : i32
    %79 = arith.index_cast %78 : i32 to index
    %c0_14 = arith.constant 0 : index
    %80 = vector.load %arg3[%79, %c0_14] : memref<96x256xf32, #tpu.memory_space<vmem>>, vector<48x256xf32>
    %c48 = arith.constant 48 : index
    %c0_15 = arith.constant 0 : index
    %81 = vector.load %arg2[%c48, %c0_15] : memref<96x8xf32, #tpu.memory_space<vmem>>, vector<48x8xf32>
    %cst_16 = arith.constant 0.000000e+00 : f32
    %82 = vector.broadcast %cst_16 : f32 to vector<48x32xf32>
    %83 = vector.extract_strided_slice %81 {offsets = [0, 0], sizes = [48, 1], strides = [1, 1]} : vector<48x8xf32> to vector<48x1xf32>
    %84 = vector.extract_strided_slice %80 {offsets = [0, 0], sizes = [48, 32], strides = [1, 1]} : vector<48x256xf32> to vector<48x32xf32>
    %85 = vector.broadcast %83 : vector<48x1xf32> to vector<48x32xf32>
    %86 = arith.mulf %85, %84 : vector<48x32xf32>
    %c0_i32_17 = arith.constant 0 : i32
    %87 = arith.cmpi sgt, %3, %c0_i32_17 : i32
    %cst_18 = arith.constant 0.000000e+00 : f32
    %88 = vector.broadcast %cst_18 : f32 to vector<48x32xf32>
    %89 = arith.select %87, %86, %88 : vector<48x32xf32>
    %90 = arith.addf %82, %89 : vector<48x32xf32>
    %91 = vector.extract_strided_slice %81 {offsets = [0, 1], sizes = [48, 1], strides = [1, 1]} : vector<48x8xf32> to vector<48x1xf32>
    %92 = vector.extract_strided_slice %80 {offsets = [0, 32], sizes = [48, 32], strides = [1, 1]} : vector<48x256xf32> to vector<48x32xf32>
    %93 = vector.broadcast %91 : vector<48x1xf32> to vector<48x32xf32>
    %94 = arith.mulf %93, %92 : vector<48x32xf32>
    %c1_i32_19 = arith.constant 1 : i32
    %95 = arith.cmpi sgt, %3, %c1_i32_19 : i32
    %cst_20 = arith.constant 0.000000e+00 : f32
    %96 = vector.broadcast %cst_20 : f32 to vector<48x32xf32>
    %97 = arith.select %95, %94, %96 : vector<48x32xf32>
    %98 = arith.addf %90, %97 : vector<48x32xf32>
    %99 = vector.extract_strided_slice %81 {offsets = [0, 2], sizes = [48, 1], strides = [1, 1]} : vector<48x8xf32> to vector<48x1xf32>
    %100 = vector.extract_strided_slice %80 {offsets = [0, 64], sizes = [48, 32], strides = [1, 1]} : vector<48x256xf32> to vector<48x32xf32>
    %101 = vector.broadcast %99 : vector<48x1xf32> to vector<48x32xf32>
    %102 = arith.mulf %101, %100 : vector<48x32xf32>
    %c2_i32_21 = arith.constant 2 : i32
    %103 = arith.cmpi sgt, %3, %c2_i32_21 : i32
    %cst_22 = arith.constant 0.000000e+00 : f32
    %104 = vector.broadcast %cst_22 : f32 to vector<48x32xf32>
    %105 = arith.select %103, %102, %104 : vector<48x32xf32>
    %106 = arith.addf %98, %105 : vector<48x32xf32>
    %107 = vector.extract_strided_slice %81 {offsets = [0, 3], sizes = [48, 1], strides = [1, 1]} : vector<48x8xf32> to vector<48x1xf32>
    %108 = vector.extract_strided_slice %80 {offsets = [0, 96], sizes = [48, 32], strides = [1, 1]} : vector<48x256xf32> to vector<48x32xf32>
    %109 = vector.broadcast %107 : vector<48x1xf32> to vector<48x32xf32>
    %110 = arith.mulf %109, %108 : vector<48x32xf32>
    %c3_i32_23 = arith.constant 3 : i32
    %111 = arith.cmpi sgt, %3, %c3_i32_23 : i32
    %cst_24 = arith.constant 0.000000e+00 : f32
    %112 = vector.broadcast %cst_24 : f32 to vector<48x32xf32>
    %113 = arith.select %111, %110, %112 : vector<48x32xf32>
    %114 = arith.addf %106, %113 : vector<48x32xf32>
    %115 = vector.extract_strided_slice %81 {offsets = [0, 4], sizes = [48, 1], strides = [1, 1]} : vector<48x8xf32> to vector<48x1xf32>
    %116 = vector.extract_strided_slice %80 {offsets = [0, 128], sizes = [48, 32], strides = [1, 1]} : vector<48x256xf32> to vector<48x32xf32>
    %117 = vector.broadcast %115 : vector<48x1xf32> to vector<48x32xf32>
    %118 = arith.mulf %117, %116 : vector<48x32xf32>
    %c4_i32_25 = arith.constant 4 : i32
    %119 = arith.cmpi sgt, %3, %c4_i32_25 : i32
    %cst_26 = arith.constant 0.000000e+00 : f32
    %120 = vector.broadcast %cst_26 : f32 to vector<48x32xf32>
    %121 = arith.select %119, %118, %120 : vector<48x32xf32>
    %122 = arith.addf %114, %121 : vector<48x32xf32>
    %123 = vector.extract_strided_slice %81 {offsets = [0, 5], sizes = [48, 1], strides = [1, 1]} : vector<48x8xf32> to vector<48x1xf32>
    %124 = vector.extract_strided_slice %80 {offsets = [0, 160], sizes = [48, 32], strides = [1, 1]} : vector<48x256xf32> to vector<48x32xf32>
    %125 = vector.broadcast %123 : vector<48x1xf32> to vector<48x32xf32>
    %126 = arith.mulf %125, %124 : vector<48x32xf32>
    %c5_i32_27 = arith.constant 5 : i32
    %127 = arith.cmpi sgt, %3, %c5_i32_27 : i32
    %cst_28 = arith.constant 0.000000e+00 : f32
    %128 = vector.broadcast %cst_28 : f32 to vector<48x32xf32>
    %129 = arith.select %127, %126, %128 : vector<48x32xf32>
    %130 = arith.addf %122, %129 : vector<48x32xf32>
    %131 = vector.extract_strided_slice %81 {offsets = [0, 6], sizes = [48, 1], strides = [1, 1]} : vector<48x8xf32> to vector<48x1xf32>
    %132 = vector.extract_strided_slice %80 {offsets = [0, 192], sizes = [48, 32], strides = [1, 1]} : vector<48x256xf32> to vector<48x32xf32>
    %133 = vector.broadcast %131 : vector<48x1xf32> to vector<48x32xf32>
    %134 = arith.mulf %133, %132 : vector<48x32xf32>
    %c6_i32_29 = arith.constant 6 : i32
    %135 = arith.cmpi sgt, %3, %c6_i32_29 : i32
    %cst_30 = arith.constant 0.000000e+00 : f32
    %136 = vector.broadcast %cst_30 : f32 to vector<48x32xf32>
    %137 = arith.select %135, %134, %136 : vector<48x32xf32>
    %138 = arith.addf %130, %137 : vector<48x32xf32>
    %139 = vector.extract_strided_slice %81 {offsets = [0, 7], sizes = [48, 1], strides = [1, 1]} : vector<48x8xf32> to vector<48x1xf32>
    %140 = vector.extract_strided_slice %80 {offsets = [0, 224], sizes = [48, 32], strides = [1, 1]} : vector<48x256xf32> to vector<48x32xf32>
    %141 = vector.broadcast %139 : vector<48x1xf32> to vector<48x32xf32>
    %142 = arith.mulf %141, %140 : vector<48x32xf32>
    %c7_i32_31 = arith.constant 7 : i32
    %143 = arith.cmpi sgt, %3, %c7_i32_31 : i32
    %cst_32 = arith.constant 0.000000e+00 : f32
    %144 = vector.broadcast %cst_32 : f32 to vector<48x32xf32>
    %145 = arith.select %143, %142, %144 : vector<48x32xf32>
    %146 = arith.addf %138, %145 : vector<48x32xf32>
    %147 = arith.index_cast %78 : i32 to index
    %c0_33 = arith.constant 0 : index
    %148 = vector.load %arg4[%147, %c0_33] : memref<96x32xf32, #tpu.memory_space<vmem>>, vector<48x32xf32>
    tpu.vector_store %arg4[%147, %c0_33], %146 {strides = array<i32>} : memref<96x32xf32, #tpu.memory_space<vmem>>, vector<48x32xf32>,
    %c1_i32_34 = arith.constant 1 : i32
    return
  }
  func.func @transform_0(%arg0: i32, %arg1: memref<4xi32, #tpu.memory_space<smem>>) -> (i32, i32) {
    %c0_i32 = arith.constant 0 : i32
    %c0_i32_0 = arith.constant 0 : i32
    %c0_i32_1 = arith.constant 0 : i32
    return %c0_i32, %c0_i32_0 : i32, i32
  }
  func.func @transform_1(%arg0: i32, %arg1: memref<4xi32, #tpu.memory_space<smem>>) -> (i32, i32) {
    %c0_i32 = arith.constant 0 : i32
    %c0_i32_0 = arith.constant 0 : i32
    return %arg0, %c0_i32 : i32, i32
  }
  func.func @transform_2(%arg0: i32, %arg1: memref<4xi32, #tpu.memory_space<smem>>) -> (i32, i32) {
    %c0_i32 = arith.constant 0 : i32
    %c0_i32_0 = arith.constant 0 : i32
    return %arg0, %c0_i32 : i32, i32
  }
}

</mosaic_0001>

<llo_original>
// kernel: tpu_custom_call.1
$region0: #{tpu_custom_call.1}
  #allocation0 [shape = 'u32[]', space=smem, size = 0x4, offset = 0x4, fixed_abs, tag = 'smem constant byte address 0x4 - core index']
  #allocation1 [shape = 'u32[144,128]{1,0:T(1,128)}', space=vmem, size = 0x12000, scoped, tag = 'internal scratch']
  #allocation2 [shape = 's32[1]{0}', space=sflag, size = 0x4, scoped, tag = 'scoped memory for tpu_custom_call.1']
  #allocation3 [shape = 'u8[512]{0}', space=smem, size = 0x200, scoped, tag = 'prefetched SMEM operand 0']
  %s0 = inlined_call_operand.vmem [shape: s32[4], index: 0, kind: input, shape index: {}]
  %s1 = inlined_call_operand.vmem [shape: f32[96,8], index: 1, kind: input, shape index: {}]
  %s2 = inlined_call_operand.hbm [shape: f32[384,256], index: 2, kind: input, shape index: {}]
  %s3 = inlined_call_operand.vmem [shape: f32[384,32], index: 3, kind: output, shape index: {}]
  %s4 = sld [smem:[#allocation0]]
  $region45: #{tpu_custom_call.1} parent=0
    _
  %s6 = ssub.s32 1, %s4
  %s7 = scalar_select 0, %s6, %s4
  %s8 = sshll.u32 %s0, 4
  %s9 = int_to_ptr.vmem [resolvable:$true] %s8
  %11 = dma.vmem_to_smem %s9, 16, [#allocation3], [#allocation2]
  %12 = dma.done [#allocation2], 16
  %13 = sfence
  $region1: #{tpu_custom_call.1} parent=0
    #allocation4 [shape = 'u8[196608]{0}', space=vmem, size = 0x30000, scoped, tag = 'input window, operand 2']
    #allocation5 [shape = 's32[2]{0}', space=sflag, size = 0x8, scoped, tag = 'scoped memory for tpu_custom_call.1']
    %14 = vsyncpa [#allocation5], 0
    %s15 = scalar_lea.sflag [#allocation5], 1
    %16 = vsyncpa %s15, 0
    loop: start=0, step=1, limit=6
    $region2: #{tpu_custom_call.1} parent=1 // loop_pre_header
      _
    $region3: #{tpu_custom_call.1} parent=1 // loop_header
      %s18 = sphi 0, %s22
      %p19 = scmp.ge.s32.totalorder %s18, 6
      %s26 = sphi 0, %s26
      %s28 = sphi 0, %s26
      %s29 = sphi 0, %s28
      %s43 = sphi 0, %s29
      %s49 = sphi 0, %s51
      %s52 = sphi 0, %s49
      %s53 = sphi 0, %s52
      %s69 = sphi 0, %s53
      %s75 = sphi 0, %s77
      %s78 = sphi 0, %s75
      %s79 = sphi 0, %s78
      %s95 = sphi 0, %s79
    $region4: #{tpu_custom_call.1} parent=1 // loop_header_branch
      %21 = sbr.rel (%p19) target = $region8
    $region5: #{tpu_custom_call.1} parent=1 // loop_body
      %s23 = ssub.s32 %s18, 1
      %s24 = ssub.s32 %s18, 2
      %s25 = sadd.s32 %s18, 1
      %s27 = sadd.s32 %s26, 1
      %p30 = scmp.eq.s32.totalorder %s18, 3
      %p31 = scmp.ne.s32.totalorder %s26, %s28
      %p32 = scmp.eq.s32.totalorder %s18, 0
      %p33 = por %p31, %p32
      %p34 = scmp.ne.s32.totalorder %s26, %s28
      %p35 = scmp.eq.s32.totalorder %s23, 3
      %p36 = por %p34, %p35
      %p37 = scmp.ne.s32.totalorder %s28, %s29
      %p38 = scmp.eq.s32.totalorder %s23, 0
      %p39 = por %p37, %p38
      %p40 = scmp.ne.s32.totalorder %s28, %s29
      %p41 = scmp.eq.s32.totalorder %s24, 3
      %p42 = por %p40, %p41
      %p44 = scmp.ne.s32.totalorder %s29, %s43
      %p45 = scmp.eq.s32.totalorder %s24, 0
      %p46 = por %p44, %p45
      %s47 = ssub.s32 %s18, %s25
      %p48 = scmp.eq.s32.totalorder %s47, 0
      %s50 = sadd.s32 %s49, 1
      %s51 = scalar_select %p48, %s49, %s50
      %p54 = pneg %p48
      %p55 = scmp.eq.s32.totalorder %s18, 3
      %p56 = por %p54, %p55
      %p57 = scmp.ne.s32.totalorder %s49, %s52
      %p58 = scmp.eq.s32.totalorder %s18, 0
      %p59 = por %p57, %p58
      %p60 = scmp.ne.s32.totalorder %s49, %s52
      %p61 = scmp.eq.s32.totalorder %s23, 3
      %p62 = por %p60, %p61
      %p63 = scmp.ne.s32.totalorder %s52, %s53
      %p64 = scmp.eq.s32.totalorder %s23, 0
      %p65 = por %p63, %p64
      %p66 = scmp.ne.s32.totalorder %s52, %s53
      %p67 = scmp.eq.s32.totalorder %s24, 3
      %p68 = por %p66, %p67
      %p70 = scmp.ne.s32.totalorder %s53, %s69
      %p71 = scmp.eq.s32.totalorder %s24, 0
      %p72 = por %p70, %p71
      %s73 = ssub.s32 %s18, %s25
      %p74 = scmp.eq.s32.totalorder %s73, 0
      %s76 = sadd.s32 %s75, 1
      %s77 = scalar_select %p74, %s75, %s76
      %p80 = pneg %p74
      %p81 = scmp.eq.s32.totalorder %s18, 3
      %p82 = por %p80, %p81
      %p83 = scmp.ne.s32.totalorder %s75, %s78
      %p84 = scmp.eq.s32.totalorder %s18, 0
      %p85 = por %p83, %p84
      %p86 = scmp.ne.s32.totalorder %s75, %s78
      %p87 = scmp.eq.s32.totalorder %s23, 3
      %p88 = por %p86, %p87
      %p89 = scmp.ne.s32.totalorder %s78, %s79
      %p90 = scmp.eq.s32.totalorder %s23, 0
      %p91 = por %p89, %p90
      %p92 = scmp.ne.s32.totalorder %s78, %s79
      %p93 = scmp.eq.s32.totalorder %s24, 3
      %p94 = por %p92, %p93
      %p96 = scmp.ne.s32.totalorder %s79, %s95
      %p97 = scmp.eq.s32.totalorder %s24, 0
      %p98 = por %p96, %p97
      %p99 = scmp.le.s32.totalorder 1, %s18
      %p100 = scmp.lt.s32.totalorder %s18, 5
      %p101 = pnand %p99, %p100
      %p102 = pneg %p101
      // Predicated region
      $region9: #{tpu_custom_call.1} parent=5 // pred_check
        _
      $region10: #{tpu_custom_call.1} parent=5 // pred_check_branch
        %104 = sbr.rel (%p101) target = $region12
      $region11: #{tpu_custom_call.1} parent=5 // pred_region
        %s105 = ssub.s32 %s18, 1
        // Predicated region
        $region13: #{tpu_custom_call.1} parent=11 // pred_check
          %p106 = pneg %p39
        $region14: #{tpu_custom_call.1} parent=11 // pred_check_branch
          %108 = sbr.rel (%p106) target = $region16
        $region15: #{tpu_custom_call.1} parent=11 // pred_region
          _
        $region16: #{tpu_custom_call.1} parent=11 // pred_fallthru
          _
      $region12: #{tpu_custom_call.1} parent=5 // pred_fallthru
        _
      %p109 = scmp.lt.s32.totalorder %s18, 4
      // Predicated region
      $region17: #{tpu_custom_call.1} parent=5 // pred_check
        %p110 = pneg %p109
      $region18: #{tpu_custom_call.1} parent=5 // pred_check_branch
        %112 = sbr.rel (%p110) target = $region20
      $region19: #{tpu_custom_call.1} parent=5 // pred_region
        // Predicated region
        $region21: #{tpu_custom_call.1} parent=19 // pred_check
          %p113 = pneg %p59
        $region22: #{tpu_custom_call.1} parent=19 // pred_check_branch
          %115 = sbr.rel (%p113) target = $region24
        $region23: #{tpu_custom_call.1} parent=19 // pred_region
          %s116 = sand.u32 %s49, 1
          %s117 = scalar_lea.sflag [#allocation5], %s116
          %s118 = sand.u32 %s49, 1
          %s119 = smul.addr %s118, 192
          %s120 = scalar_lea.vmem [#allocation4], %s119
          %s121 = smul.u32 12, %s18
          %s123 = ssub.s32 3072, 3072
          %124 = vsyncadd %s117, %s123
          %s125 = smul.addr %s121, 2
          %s126 = smul.addr %s125, 128
          %s127 = scalar_lea.hbm %s2, %s126
          %s128 = sshll.u32 %s120, 4
          %s129 = int_to_ptr.vmem [resolvable:$true] %s128
          %134 = dma.hbm_to_vmem [thread:$0]  %s127, 3072, %s129, %s117, 256, 256, 16
        $region24: #{tpu_custom_call.1} parent=19 // pred_fallthru
          _
      $region20: #{tpu_custom_call.1} parent=5 // pred_fallthru
        _
      %p135 = scmp.le.s32.totalorder 1, %s18
      %p136 = scmp.lt.s32.totalorder %s18, 5
      %p137 = pnand %p135, %p136
      %p138 = pneg %p137
      // Predicated region
      $region25: #{tpu_custom_call.1} parent=5 // pred_check
        _
      $region26: #{tpu_custom_call.1} parent=5 // pred_check_branch
        %140 = sbr.rel (%p137) target = $region28
      $region27: #{tpu_custom_call.1} parent=5 // pred_region
        %s141 = ssub.s32 %s18, 1
        %s142 = sand.u32 %s52, 1
        %s143 = scalar_lea.sflag [#allocation5], %s142
        %s144 = sand.u32 %s52, 1
        %s145 = smul.addr %s144, 192
        %s146 = scalar_lea.vmem [#allocation4], %s145
        // Predicated region
        $region29: #{tpu_custom_call.1} parent=27 // pred_check
          %p147 = pneg %p65
        $region30: #{tpu_custom_call.1} parent=27 // pred_check_branch
          %149 = sbr.rel (%p147) target = $region32
        $region31: #{tpu_custom_call.1} parent=27 // pred_region
          %150 = dma.done %s143, 3072
        $region32: #{tpu_custom_call.1} parent=27 // pred_fallthru
          _
        %p151 = pneg %p39
        %p152 = pneg %p36
        %s153 = sand.u32 %s52, 1
        %s154 = scalar_lea.sflag [#allocation5], %s153
        %s155 = sand.u32 %s52, 1
        %s156 = smul.addr %s155, 192
        %s157 = scalar_lea.vmem [#allocation4], %s156
        %p158 = pneg %p65
        %p159 = pneg %p62
        %p160 = pneg %p91
        %p161 = pneg %p88
        %s162 = smul.u32 12, %s23
        %p163 = scmp.lt.s32.totalorder %s162, 47
        %s164 = scalar_select %p163, %s162, 47
        %s165 = smul.addr %s164, 8
        %s166 = scalar_lea.vmem %s3, %s165
        %s167 = smul.u32 12, %s23
        %s168 = smul.u32 12, %s23
        %p169 = scmp.lt.s32.totalorder %s168, 47
        %s170 = scalar_select %p169, %s168, 47
        %s171 = smul.addr %s170, 8
        %s172 = scalar_lea.vmem %s3, %s171
        %s173 = smul.u32 12, %s23
        %s174 = sld [smem:[#allocation3 + %s23]]
        %s175 = smul.u32 0, 2
        %s176 = smul.addr %s175, 8
        %s177 = scalar_lea.vmem %s146, %s176 [#allocation4]
        %v178 = vld [vmem:[%s177] sm:$0xff]
        %v179 = vld [vmem:[%s177 + $0x8] sm:$0xff]
        %v180 = vld [vmem:[%s177 + $0x10] sm:$0xff]
        %v181 = vld [vmem:[%s177 + $0x18] sm:$0xff]
        %v182 = vld [vmem:[%s177 + $0x20] sm:$0xff]
        %v183 = vld [vmem:[%s177 + $0x28] sm:$0xff]
        %v184 = vld [vmem:[%s177 + $0x30] sm:$0xff]
        %v185 = vld [vmem:[%s177 + $0x38] sm:$0xff]
        %v186 = vld [vmem:[%s177 + $0x40] sm:$0xff]
        %v187 = vld [vmem:[%s177 + $0x48] sm:$0xff]
        %v188 = vld [vmem:[%s177 + $0x50] sm:$0xff]
        %v189 = vld [vmem:[%s177 + $0x58] sm:$0xff]
        %v190 = vld [vmem:[%s1] sm:$0xff]
        %v191 = vld [vmem:[%s1 + $0x8] sm:$0xff]
        %v192 = vld [vmem:[%s1 + $0x10] sm:$0xff]
        %v193 = vld [vmem:[%s1 + $0x18] sm:$0xff]
        %v194 = vld [vmem:[%s1 + $0x20] sm:$0xff]
        %v195 = vld [vmem:[%s1 + $0x28] sm:$0xff]
        %197 = vset.pattern.permute.xlu0 0
        %198 = vperm.xlu0 %197, %v190
        %v199 = vpop.permute.xlu0 %198
        %202 = vset.pattern.permute.xlu0 0
        %203 = vperm.xlu0 %202, %v191
        %v204 = vpop.permute.xlu0 %203
        %207 = vset.pattern.permute.xlu0 0
        %208 = vperm.xlu0 %207, %v192
        %v209 = vpop.permute.xlu0 %208
        %212 = vset.pattern.permute.xlu0 0
        %213 = vperm.xlu0 %212, %v193
        %v214 = vpop.permute.xlu0 %213
        %217 = vset.pattern.permute.xlu0 0
        %218 = vperm.xlu0 %217, %v194
        %v219 = vpop.permute.xlu0 %218
        %222 = vset.pattern.permute.xlu0 0
        %223 = vperm.xlu0 %222, %v195
        %v224 = vpop.permute.xlu0 %223
        %v226 = vmul.f32 %v199, %v178
        %v227 = vmul.f32 %v204, %v180
        %v228 = vmul.f32 %v209, %v182
        %v229 = vmul.f32 %v214, %v184
        %v230 = vmul.f32 %v219, %v186
        %v231 = vmul.f32 %v224, %v188
        %p232 = scmp.gt.s32.totalorder %s174, 0
        %s233 = scalar_select %p232, 1, 0
        %v234 = vstv %s233
        %vm235 = vcmp.eq.s32.totalorder %v234, 1
        %v236 = vsel %vm235, %v226, 0.0
        %v237 = vsel %vm235, %v227, 0.0
        %v238 = vsel %vm235, %v228, 0.0
        %v239 = vsel %vm235, %v229, 0.0
        %v240 = vsel %vm235, %v230, 0.0
        %v241 = vsel %vm235, %v231, 0.0
        %v242 = vadd.f32 %v236, 0.0
        %v243 = vadd.f32 %v237, 0.0
        %v244 = vadd.f32 %v238, 0.0
        %v245 = vadd.f32 %v239, 0.0
        %v246 = vadd.f32 %v240, 0.0
        %v247 = vadd.f32 %v241, 0.0
        %248 = vset.pattern.permute.xlu0 1
        %249 = vperm.xlu0 %248, %v190
        %v250 = vpop.permute.xlu0 %249
        %252 = vset.pattern.permute.xlu0 1
        %253 = vperm.xlu0 %252, %v191
        %v254 = vpop.permute.xlu0 %253
        %256 = vset.pattern.permute.xlu0 1
        %257 = vperm.xlu0 %256, %v192
        %v258 = vpop.permute.xlu0 %257
        %260 = vset.pattern.permute.xlu0 1
        %261 = vperm.xlu0 %260, %v193
        %v262 = vpop.permute.xlu0 %261
        %264 = vset.pattern.permute.xlu0 1
        %265 = vperm.xlu0 %264, %v194
        %v266 = vpop.permute.xlu0 %265
        %268 = vset.pattern.permute.xlu0 1
        %269 = vperm.xlu0 %268, %v195
        %v270 = vpop.permute.xlu0 %269
        %v272 = vmul.f32 %v250, %v178
        %v273 = vmul.f32 %v254, %v180
        %v274 = vmul.f32 %v258, %v182
        %v275 = vmul.f32 %v262, %v184
        %v276 = vmul.f32 %v266, %v186
        %v277 = vmul.f32 %v270, %v188
        %p278 = scmp.gt.s32.totalorder %s174, 1
        %s279 = scalar_select %p278, 1, 0
        %v280 = vstv %s279
        %vm281 = vcmp.eq.s32.totalorder %v280, 1
        %v282 = vsel %vm281, %v272, 0.0
        %v283 = vsel %vm281, %v273, 0.0
        %v284 = vsel %vm281, %v274, 0.0
        %v285 = vsel %vm281, %v275, 0.0
        %v286 = vsel %vm281, %v276, 0.0
        %v287 = vsel %vm281, %v277, 0.0
        %294 = vrot.lane.b32.xlu0 %v282, 96
        %v295 = vpop.permute.xlu0 %294
        %296 = vrot.lane.b32.xlu0 %v283, 96
        %v297 = vpop.permute.xlu0 %296
        %298 = vrot.lane.b32.xlu0 %v284, 96
        %v299 = vpop.permute.xlu0 %298
        %300 = vrot.lane.b32.xlu0 %v285, 96
        %v301 = vpop.permute.xlu0 %300
        %302 = vrot.lane.b32.xlu0 %v286, 96
        %v303 = vpop.permute.xlu0 %302
        %304 = vrot.lane.b32.xlu0 %v287, 96
        %v305 = vpop.permute.xlu0 %304
        %v312 = vadd.f32 %v242, %v295
        %v313 = vadd.f32 %v243, %v297
        %v314 = vadd.f32 %v244, %v299
        %v315 = vadd.f32 %v245, %v301
        %v316 = vadd.f32 %v246, %v303
        %v317 = vadd.f32 %v247, %v305
        %318 = vset.pattern.permute.xlu0 2
        %319 = vperm.xlu0 %318, %v190
        %v320 = vpop.permute.xlu0 %319
        %322 = vset.pattern.permute.xlu0 2
        %323 = vperm.xlu0 %322, %v191
        %v324 = vpop.permute.xlu0 %323
        %326 = vset.pattern.permute.xlu0 2
        %327 = vperm.xlu0 %326, %v192
        %v328 = vpop.permute.xlu0 %327
        %330 = vset.pattern.permute.xlu0 2
        %331 = vperm.xlu0 %330, %v193
        %v332 = vpop.permute.xlu0 %331
        %334 = vset.pattern.permute.xlu0 2
        %335 = vperm.xlu0 %334, %v194
        %v336 = vpop.permute.xlu0 %335
        %338 = vset.pattern.permute.xlu0 2
        %339 = vperm.xlu0 %338, %v195
        %v340 = vpop.permute.xlu0 %339
        %v342 = vmul.f32 %v320, %v178
        %v343 = vmul.f32 %v324, %v180
        %v344 = vmul.f32 %v328, %v182
        %v345 = vmul.f32 %v332, %v184
        %v346 = vmul.f32 %v336, %v186
        %v347 = vmul.f32 %v340, %v188
        %p348 = scmp.gt.s32.totalorder %s174, 2
        %s349 = scalar_select %p348, 1, 0
        %v350 = vstv %s349
        %vm351 = vcmp.eq.s32.totalorder %v350, 1
        %v352 = vsel %vm351, %v342, 0.0
        %v353 = vsel %vm351, %v343, 0.0
        %v354 = vsel %vm351, %v344, 0.0
        %v355 = vsel %vm351, %v345, 0.0
        %v356 = vsel %vm351, %v346, 0.0
        %v357 = vsel %vm351, %v347, 0.0
        %364 = vrot.lane.b32.xlu0 %v352, 64
        %v365 = vpop.permute.xlu0 %364
        %366 = vrot.lane.b32.xlu0 %v353, 64
        %v367 = vpop.permute.xlu0 %366
        %368 = vrot.lane.b32.xlu0 %v354, 64
        %v369 = vpop.permute.xlu0 %368
        %370 = vrot.lane.b32.xlu0 %v355, 64
        %v371 = vpop.permute.xlu0 %370
        %372 = vrot.lane.b32.xlu0 %v356, 64
        %v373 = vpop.permute.xlu0 %372
        %374 = vrot.lane.b32.xlu0 %v357, 64
        %v375 = vpop.permute.xlu0 %374
        %v382 = vadd.f32 %v312, %v365
        %v383 = vadd.f32 %v313, %v367
        %v384 = vadd.f32 %v314, %v369
        %v385 = vadd.f32 %v315, %v371
        %v386 = vadd.f32 %v316, %v373
        %v387 = vadd.f32 %v317, %v375
        %388 = vset.pattern.permute.xlu0 3
        %389 = vperm.xlu0 %388, %v190
        %v390 = vpop.permute.xlu0 %389
        %392 = vset.pattern.permute.xlu0 3
        %393 = vperm.xlu0 %392, %v191
        %v394 = vpop.permute.xlu0 %393
        %396 = vset.pattern.permute.xlu0 3
        %397 = vperm.xlu0 %396, %v192
        %v398 = vpop.permute.xlu0 %397
        %400 = vset.pattern.permute.xlu0 3
        %401 = vperm.xlu0 %400, %v193
        %v402 = vpop.permute.xlu0 %401
        %404 = vset.pattern.permute.xlu0 3
        %405 = vperm.xlu0 %404, %v194
        %v406 = vpop.permute.xlu0 %405
        %408 = vset.pattern.permute.xlu0 3
        %409 = vperm.xlu0 %408, %v195
        %v410 = vpop.permute.xlu0 %409
        %v412 = vmul.f32 %v390, %v178
        %v413 = vmul.f32 %v394, %v180
        %v414 = vmul.f32 %v398, %v182
        %v415 = vmul.f32 %v402, %v184
        %v416 = vmul.f32 %v406, %v186
        %v417 = vmul.f32 %v410, %v188
        %p418 = scmp.gt.s32.totalorder %s174, 3
        %s419 = scalar_select %p418, 1, 0
        %v420 = vstv %s419
        %vm421 = vcmp.eq.s32.totalorder %v420, 1
        %v422 = vsel %vm421, %v412, 0.0
        %v423 = vsel %vm421, %v413, 0.0
        %v424 = vsel %vm421, %v414, 0.0
        %v425 = vsel %vm421, %v415, 0.0
        %v426 = vsel %vm421, %v416, 0.0
        %v427 = vsel %vm421, %v417, 0.0
        %434 = vrot.lane.b32.xlu0 %v422, 32
        %v435 = vpop.permute.xlu0 %434
        %436 = vrot.lane.b32.xlu0 %v423, 32
        %v437 = vpop.permute.xlu0 %436
        %438 = vrot.lane.b32.xlu0 %v424, 32
        %v439 = vpop.permute.xlu0 %438
        %440 = vrot.lane.b32.xlu0 %v425, 32
        %v441 = vpop.permute.xlu0 %440
        %442 = vrot.lane.b32.xlu0 %v426, 32
        %v443 = vpop.permute.xlu0 %442
        %444 = vrot.lane.b32.xlu0 %v427, 32
        %v445 = vpop.permute.xlu0 %444
        %v452 = vadd.f32 %v382, %v435
        %v453 = vadd.f32 %v383, %v437
        %v454 = vadd.f32 %v384, %v439
        %v455 = vadd.f32 %v385, %v441
        %v456 = vadd.f32 %v386, %v443
        %v457 = vadd.f32 %v387, %v445
        %458 = vset.pattern.permute.xlu0 4
        %459 = vperm.xlu0 %458, %v190
        %v460 = vpop.permute.xlu0 %459
        %462 = vset.pattern.permute.xlu0 4
        %463 = vperm.xlu0 %462, %v191
        %v464 = vpop.permute.xlu0 %463
        %466 = vset.pattern.permute.xlu0 4
        %467 = vperm.xlu0 %466, %v192
        %v468 = vpop.permute.xlu0 %467
        %470 = vset.pattern.permute.xlu0 4
        %471 = vperm.xlu0 %470, %v193
        %v472 = vpop.permute.xlu0 %471
        %474 = vset.pattern.permute.xlu0 4
        %475 = vperm.xlu0 %474, %v194
        %v476 = vpop.permute.xlu0 %475
        %478 = vset.pattern.permute.xlu0 4
        %479 = vperm.xlu0 %478, %v195
        %v480 = vpop.permute.xlu0 %479
        %v482 = vmul.f32 %v460, %v179
        %v483 = vmul.f32 %v464, %v181
        %v484 = vmul.f32 %v468, %v183
        %v485 = vmul.f32 %v472, %v185
        %v486 = vmul.f32 %v476, %v187
        %v487 = vmul.f32 %v480, %v189
        %p488 = scmp.gt.s32.totalorder %s174, 4
        %s489 = scalar_select %p488, 1, 0
        %v490 = vstv %s489
        %vm491 = vcmp.eq.s32.totalorder %v490, 1
        %v492 = vsel %vm491, %v482, 0.0
        %v493 = vsel %vm491, %v483, 0.0
        %v494 = vsel %vm491, %v484, 0.0
        %v495 = vsel %vm491, %v485, 0.0
        %v496 = vsel %vm491, %v486, 0.0
        %v497 = vsel %vm491, %v487, 0.0
        %v498 = vadd.f32 %v452, %v492
        %v499 = vadd.f32 %v453, %v493
        %v500 = vadd.f32 %v454, %v494
        %v501 = vadd.f32 %v455, %v495
        %v502 = vadd.f32 %v456, %v496
        %v503 = vadd.f32 %v457, %v497
        %504 = vset.pattern.permute.xlu0 5
        %505 = vperm.xlu0 %504, %v190
        %v506 = vpop.permute.xlu0 %505
        %508 = vset.pattern.permute.xlu0 5
        %509 = vperm.xlu0 %508, %v191
        %v510 = vpop.permute.xlu0 %509
        %512 = vset.pattern.permute.xlu0 5
        %513 = vperm.xlu0 %512, %v192
        %v514 = vpop.permute.xlu0 %513
        %516 = vset.pattern.permute.xlu0 5
        %517 = vperm.xlu0 %516, %v193
        %v518 = vpop.permute.xlu0 %517
        %520 = vset.pattern.permute.xlu0 5
        %521 = vperm.xlu0 %520, %v194
        %v522 = vpop.permute.xlu0 %521
        %524 = vset.pattern.permute.xlu0 5
        %525 = vperm.xlu0 %524, %v195
        %v526 = vpop.permute.xlu0 %525
        %v528 = vmul.f32 %v506, %v179
        %v529 = vmul.f32 %v510, %v181
        %v530 = vmul.f32 %v514, %v183
        %v531 = vmul.f32 %v518, %v185
        %v532 = vmul.f32 %v522, %v187
        %v533 = vmul.f32 %v526, %v189
        %p534 = scmp.gt.s32.totalorder %s174, 5
        %s535 = scalar_select %p534, 1, 0
        %v536 = vstv %s535
        %vm537 = vcmp.eq.s32.totalorder %v536, 1
        %v538 = vsel %vm537, %v528, 0.0
        %v539 = vsel %vm537, %v529, 0.0
        %v540 = vsel %vm537, %v530, 0.0
        %v541 = vsel %vm537, %v531, 0.0
        %v542 = vsel %vm537, %v532, 0.0
        %v543 = vsel %vm537, %v533, 0.0
        %550 = vrot.lane.b32.xlu0 %v538, 96
        %v551 = vpop.permute.xlu0 %550
        %552 = vrot.lane.b32.xlu0 %v539, 96
        %v553 = vpop.permute.xlu0 %552
        %554 = vrot.lane.b32.xlu0 %v540, 96
        %v555 = vpop.permute.xlu0 %554
        %556 = vrot.lane.b32.xlu0 %v541, 96
        %v557 = vpop.permute.xlu0 %556
        %558 = vrot.lane.b32.xlu0 %v542, 96
        %v559 = vpop.permute.xlu0 %558
        %560 = vrot.lane.b32.xlu0 %v543, 96
        %v561 = vpop.permute.xlu0 %560
        %v568 = vadd.f32 %v498, %v551
        %v569 = vadd.f32 %v499, %v553
        %v570 = vadd.f32 %v500, %v555
        %v571 = vadd.f32 %v501, %v557
        %v572 = vadd.f32 %v502, %v559
        %v573 = vadd.f32 %v503, %v561
        %574 = vset.pattern.permute.xlu0 6
        %575 = vperm.xlu0 %574, %v190
        %v576 = vpop.permute.xlu0 %575
        %578 = vset.pattern.permute.xlu0 6
        %579 = vperm.xlu0 %578, %v191
        %v580 = vpop.permute.xlu0 %579
        %582 = vset.pattern.permute.xlu0 6
        %583 = vperm.xlu0 %582, %v192
        %v584 = vpop.permute.xlu0 %583
        %586 = vset.pattern.permute.xlu0 6
        %587 = vperm.xlu0 %586, %v193
        %v588 = vpop.permute.xlu0 %587
        %590 = vset.pattern.permute.xlu0 6
        %591 = vperm.xlu0 %590, %v194
        %v592 = vpop.permute.xlu0 %591
        %594 = vset.pattern.permute.xlu0 6
        %595 = vperm.xlu0 %594, %v195
        %v596 = vpop.permute.xlu0 %595
        %v598 = vmul.f32 %v576, %v179
        %v599 = vmul.f32 %v580, %v181
        %v600 = vmul.f32 %v584, %v183
        %v601 = vmul.f32 %v588, %v185
        %v602 = vmul.f32 %v592, %v187
        %v603 = vmul.f32 %v596, %v189
        %p604 = scmp.gt.s32.totalorder %s174, 6
        %s605 = scalar_select %p604, 1, 0
        %v606 = vstv %s605
        %vm607 = vcmp.eq.s32.totalorder %v606, 1
        %v608 = vsel %vm607, %v598, 0.0
        %v609 = vsel %vm607, %v599, 0.0
        %v610 = vsel %vm607, %v600, 0.0
        %v611 = vsel %vm607, %v601, 0.0
        %v612 = vsel %vm607, %v602, 0.0
        %v613 = vsel %vm607, %v603, 0.0
        %620 = vrot.lane.b32.xlu0 %v608, 64
        %v621 = vpop.permute.xlu0 %620
        %622 = vrot.lane.b32.xlu0 %v609, 64
        %v623 = vpop.permute.xlu0 %622
        %624 = vrot.lane.b32.xlu0 %v610, 64
        %v625 = vpop.permute.xlu0 %624
        %626 = vrot.lane.b32.xlu0 %v611, 64
        %v627 = vpop.permute.xlu0 %626
        %628 = vrot.lane.b32.xlu0 %v612, 64
        %v629 = vpop.permute.xlu0 %628
        %630 = vrot.lane.b32.xlu0 %v613, 64
        %v631 = vpop.permute.xlu0 %630
        %v638 = vadd.f32 %v568, %v621
        %v639 = vadd.f32 %v569, %v623
        %v640 = vadd.f32 %v570, %v625
        %v641 = vadd.f32 %v571, %v627
        %v642 = vadd.f32 %v572, %v629
        %v643 = vadd.f32 %v573, %v631
        %644 = vset.pattern.permute.xlu0 7
        %645 = vperm.xlu0 %644, %v190
        %v646 = vpop.permute.xlu0 %645
        %648 = vset.pattern.permute.xlu0 7
        %649 = vperm.xlu0 %648, %v191
        %v650 = vpop.permute.xlu0 %649
        %652 = vset.pattern.permute.xlu0 7
        %653 = vperm.xlu0 %652, %v192
        %v654 = vpop.permute.xlu0 %653
        %656 = vset.pattern.permute.xlu0 7
        %657 = vperm.xlu0 %656, %v193
        %v658 = vpop.permute.xlu0 %657
        %660 = vset.pattern.permute.xlu0 7
        %661 = vperm.xlu0 %660, %v194
        %v662 = vpop.permute.xlu0 %661
        %664 = vset.pattern.permute.xlu0 7
        %665 = vperm.xlu0 %664, %v195
        %v666 = vpop.permute.xlu0 %665
        %v668 = vmul.f32 %v646, %v179
        %v669 = vmul.f32 %v650, %v181
        %v670 = vmul.f32 %v654, %v183
        %v671 = vmul.f32 %v658, %v185
        %v672 = vmul.f32 %v662, %v187
        %v673 = vmul.f32 %v666, %v189
        %p674 = scmp.gt.s32.totalorder %s174, 7
        %s675 = scalar_select %p674, 1, 0
        %v676 = vstv %s675
        %vm677 = vcmp.eq.s32.totalorder %v676, 1
        %v678 = vsel %vm677, %v668, 0.0
        %v679 = vsel %vm677, %v669, 0.0
        %v680 = vsel %vm677, %v670, 0.0
        %v681 = vsel %vm677, %v671, 0.0
        %v682 = vsel %vm677, %v672, 0.0
        %v683 = vsel %vm677, %v673, 0.0
        %690 = vrot.lane.b32.xlu0 %v678, 32
        %v691 = vpop.permute.xlu0 %690
        %692 = vrot.lane.b32.xlu0 %v679, 32
        %v693 = vpop.permute.xlu0 %692
        %694 = vrot.lane.b32.xlu0 %v680, 32
        %v695 = vpop.permute.xlu0 %694
        %696 = vrot.lane.b32.xlu0 %v681, 32
        %v697 = vpop.permute.xlu0 %696
        %698 = vrot.lane.b32.xlu0 %v682, 32
        %v699 = vpop.permute.xlu0 %698
        %700 = vrot.lane.b32.xlu0 %v683, 32
        %v701 = vpop.permute.xlu0 %700
        %v708 = vadd.f32 %v638, %v691
        %v709 = vadd.f32 %v639, %v693
        %v710 = vadd.f32 %v640, %v695
        %v711 = vadd.f32 %v641, %v697
        %v712 = vadd.f32 %v642, %v699
        %v713 = vadd.f32 %v643, %v701
        %vm714 = vcmask 261120
        %715 = vst.msk [vmem:[%s172] sm:$0xff] %vm714, %v708
        %716 = vst.msk [vmem:[%s172 + $0x8] sm:$0xff] %vm714, %v709
        %717 = vst.msk [vmem:[%s172 + $0x10] sm:$0xff] %vm714, %v710
        %718 = vst.msk [vmem:[%s172 + $0x18] sm:$0xff] %vm714, %v711
        %719 = vst.msk [vmem:[%s172 + $0x20] sm:$0xff] %vm714, %v712
        %720 = vst.msk [vmem:[%s172 + $0x28] sm:$0xff] %vm714, %v713
        %s721 = smul.u32 6, 2
        %s722 = smul.addr %s721, 8
        %s723 = scalar_lea.vmem %s146, %s722 [#allocation4]
        %v724 = vld [vmem:[%s723] sm:$0xff]
        %v725 = vld [vmem:[%s723 + $0x8] sm:$0xff]
        %v726 = vld [vmem:[%s723 + $0x10] sm:$0xff]
        %v727 = vld [vmem:[%s723 + $0x18] sm:$0xff]
        %v728 = vld [vmem:[%s723 + $0x20] sm:$0xff]
        %v729 = vld [vmem:[%s723 + $0x28] sm:$0xff]
        %v730 = vld [vmem:[%s723 + $0x30] sm:$0xff]
        %v731 = vld [vmem:[%s723 + $0x38] sm:$0xff]
        %v732 = vld [vmem:[%s723 + $0x40] sm:$0xff]
        %v733 = vld [vmem:[%s723 + $0x48] sm:$0xff]
        %v734 = vld [vmem:[%s723 + $0x50] sm:$0xff]
        %v735 = vld [vmem:[%s723 + $0x58] sm:$0xff]
        %v736 = vld [vmem:[%s1 + $0x30] sm:$0xff]
        %v737 = vld [vmem:[%s1 + $0x38] sm:$0xff]
        %v738 = vld [vmem:[%s1 + $0x40] sm:$0xff]
        %v739 = vld [vmem:[%s1 + $0x48] sm:$0xff]
        %v740 = vld [vmem:[%s1 + $0x50] sm:$0xff]
        %v741 = vld [vmem:[%s1 + $0x58] sm:$0xff]
        %743 = vset.pattern.permute.xlu0 0
        %744 = vperm.xlu0 %743, %v736
        %v745 = vpop.permute.xlu0 %744
        %748 = vset.pattern.permute.xlu0 0
        %749 = vperm.xlu0 %748, %v737
        %v750 = vpop.permute.xlu0 %749
        %753 = vset.pattern.permute.xlu0 0
        %754 = vperm.xlu0 %753, %v738
        %v755 = vpop.permute.xlu0 %754
        %758 = vset.pattern.permute.xlu0 0
        %759 = vperm.xlu0 %758, %v739
        %v760 = vpop.permute.xlu0 %759
        %763 = vset.pattern.permute.xlu0 0
        %764 = vperm.xlu0 %763, %v740
        %v765 = vpop.permute.xlu0 %764
        %768 = vset.pattern.permute.xlu0 0
        %769 = vperm.xlu0 %768, %v741
        %v770 = vpop.permute.xlu0 %769
        %v772 = vmul.f32 %v745, %v724
        %v773 = vmul.f32 %v750, %v726
        %v774 = vmul.f32 %v755, %v728
        %v775 = vmul.f32 %v760, %v730
        %v776 = vmul.f32 %v765, %v732
        %v777 = vmul.f32 %v770, %v734
        %v778 = vsel %vm235, %v772, 0.0
        %v779 = vsel %vm235, %v773, 0.0
        %v780 = vsel %vm235, %v774, 0.0
        %v781 = vsel %vm235, %v775, 0.0
        %v782 = vsel %vm235, %v776, 0.0
        %v783 = vsel %vm235, %v777, 0.0
        %v784 = vadd.f32 %v778, 0.0
        %v785 = vadd.f32 %v779, 0.0
        %v786 = vadd.f32 %v780, 0.0
        %v787 = vadd.f32 %v781, 0.0
        %v788 = vadd.f32 %v782, 0.0
        %v789 = vadd.f32 %v783, 0.0
        %790 = vset.pattern.permute.xlu0 1
        %791 = vperm.xlu0 %790, %v736
        %v792 = vpop.permute.xlu0 %791
        %794 = vset.pattern.permute.xlu0 1
        %795 = vperm.xlu0 %794, %v737
        %v796 = vpop.permute.xlu0 %795
        %798 = vset.pattern.permute.xlu0 1
        %799 = vperm.xlu0 %798, %v738
        %v800 = vpop.permute.xlu0 %799
        %802 = vset.pattern.permute.xlu0 1
        %803 = vperm.xlu0 %802, %v739
        %v804 = vpop.permute.xlu0 %803
        %806 = vset.pattern.permute.xlu0 1
        %807 = vperm.xlu0 %806, %v740
        %v808 = vpop.permute.xlu0 %807
        %810 = vset.pattern.permute.xlu0 1
        %811 = vperm.xlu0 %810, %v741
        %v812 = vpop.permute.xlu0 %811
        %v814 = vmul.f32 %v792, %v724
        %v815 = vmul.f32 %v796, %v726
        %v816 = vmul.f32 %v800, %v728
        %v817 = vmul.f32 %v804, %v730
        %v818 = vmul.f32 %v808, %v732
        %v819 = vmul.f32 %v812, %v734
        %v820 = vsel %vm281, %v814, 0.0
        %v821 = vsel %vm281, %v815, 0.0
        %v822 = vsel %vm281, %v816, 0.0
        %v823 = vsel %vm281, %v817, 0.0
        %v824 = vsel %vm281, %v818, 0.0
        %v825 = vsel %vm281, %v819, 0.0
        %832 = vrot.lane.b32.xlu0 %v820, 96
        %v833 = vpop.permute.xlu0 %832
        %834 = vrot.lane.b32.xlu0 %v821, 96
        %v835 = vpop.permute.xlu0 %834
        %836 = vrot.lane.b32.xlu0 %v822, 96
        %v837 = vpop.permute.xlu0 %836
        %838 = vrot.lane.b32.xlu0 %v823, 96
        %v839 = vpop.permute.xlu0 %838
        %840 = vrot.lane.b32.xlu0 %v824, 96
        %v841 = vpop.permute.xlu0 %840
        %842 = vrot.lane.b32.xlu0 %v825, 96
        %v843 = vpop.permute.xlu0 %842
        %v850 = vadd.f32 %v784, %v833
        %v851 = vadd.f32 %v785, %v835
        %v852 = vadd.f32 %v786, %v837
        %v853 = vadd.f32 %v787, %v839
        %v854 = vadd.f32 %v788, %v841
        %v855 = vadd.f32 %v789, %v843
        %856 = vset.pattern.permute.xlu0 2
        %857 = vperm.xlu0 %856, %v736
        %v858 = vpop.permute.xlu0 %857
        %860 = vset.pattern.permute.xlu0 2
        %861 = vperm.xlu0 %860, %v737
        %v862 = vpop.permute.xlu0 %861
        %864 = vset.pattern.permute.xlu0 2
        %865 = vperm.xlu0 %864, %v738
        %v866 = vpop.permute.xlu0 %865
        %868 = vset.pattern.permute.xlu0 2
        %869 = vperm.xlu0 %868, %v739
        %v870 = vpop.permute.xlu0 %869
        %872 = vset.pattern.permute.xlu0 2
        %873 = vperm.xlu0 %872, %v740
        %v874 = vpop.permute.xlu0 %873
        %876 = vset.pattern.permute.xlu0 2
        %877 = vperm.xlu0 %876, %v741
        %v878 = vpop.permute.xlu0 %877
        %v880 = vmul.f32 %v858, %v724
        %v881 = vmul.f32 %v862, %v726
        %v882 = vmul.f32 %v866, %v728
        %v883 = vmul.f32 %v870, %v730
        %v884 = vmul.f32 %v874, %v732
        %v885 = vmul.f32 %v878, %v734
        %v886 = vsel %vm351, %v880, 0.0
        %v887 = vsel %vm351, %v881, 0.0
        %v888 = vsel %vm351, %v882, 0.0
        %v889 = vsel %vm351, %v883, 0.0
        %v890 = vsel %vm351, %v884, 0.0
        %v891 = vsel %vm351, %v885, 0.0
        %898 = vrot.lane.b32.xlu0 %v886, 64
        %v899 = vpop.permute.xlu0 %898
        %900 = vrot.lane.b32.xlu0 %v887, 64
        %v901 = vpop.permute.xlu0 %900
        %902 = vrot.lane.b32.xlu0 %v888, 64
        %v903 = vpop.permute.xlu0 %902
        %904 = vrot.lane.b32.xlu0 %v889, 64
        %v905 = vpop.permute.xlu0 %904
        %906 = vrot.lane.b32.xlu0 %v890, 64
        %v907 = vpop.permute.xlu0 %906
        %908 = vrot.lane.b32.xlu0 %v891, 64
        %v909 = vpop.permute.xlu0 %908
        %v916 = vadd.f32 %v850, %v899
        %v917 = vadd.f32 %v851, %v901
        %v918 = vadd.f32 %v852, %v903
        %v919 = vadd.f32 %v853, %v905
        %v920 = vadd.f32 %v854, %v907
        %v921 = vadd.f32 %v855, %v909
        %922 = vset.pattern.permute.xlu0 3
        %923 = vperm.xlu0 %922, %v736
        %v924 = vpop.permute.xlu0 %923
        %926 = vset.pattern.permute.xlu0 3
        %927 = vperm.xlu0 %926, %v737
        %v928 = vpop.permute.xlu0 %927
        %930 = vset.pattern.permute.xlu0 3
        %931 = vperm.xlu0 %930, %v738
        %v932 = vpop.permute.xlu0 %931
        %934 = vset.pattern.permute.xlu0 3
        %935 = vperm.xlu0 %934, %v739
        %v936 = vpop.permute.xlu0 %935
        %938 = vset.pattern.permute.xlu0 3
        %939 = vperm.xlu0 %938, %v740
        %v940 = vpop.permute.xlu0 %939
        %942 = vset.pattern.permute.xlu0 3
        %943 = vperm.xlu0 %942, %v741
        %v944 = vpop.permute.xlu0 %943
        %v946 = vmul.f32 %v924, %v724
        %v947 = vmul.f32 %v928, %v726
        %v948 = vmul.f32 %v932, %v728
        %v949 = vmul.f32 %v936, %v730
        %v950 = vmul.f32 %v940, %v732
        %v951 = vmul.f32 %v944, %v734
        %v952 = vsel %vm421, %v946, 0.0
        %v953 = vsel %vm421, %v947, 0.0
        %v954 = vsel %vm421, %v948, 0.0
        %v955 = vsel %vm421, %v949, 0.0
        %v956 = vsel %vm421, %v950, 0.0
        %v957 = vsel %vm421, %v951, 0.0
        %964 = vrot.lane.b32.xlu0 %v952, 32
        %v965 = vpop.permute.xlu0 %964
        %966 = vrot.lane.b32.xlu0 %v953, 32
        %v967 = vpop.permute.xlu0 %966
        %968 = vrot.lane.b32.xlu0 %v954, 32
        %v969 = vpop.permute.xlu0 %968
        %970 = vrot.lane.b32.xlu0 %v955, 32
        %v971 = vpop.permute.xlu0 %970
        %972 = vrot.lane.b32.xlu0 %v956, 32
        %v973 = vpop.permute.xlu0 %972
        %974 = vrot.lane.b32.xlu0 %v957, 32
        %v975 = vpop.permute.xlu0 %974
        %v982 = vadd.f32 %v916, %v965
        %v983 = vadd.f32 %v917, %v967
        %v984 = vadd.f32 %v918, %v969
        %v985 = vadd.f32 %v919, %v971
        %v986 = vadd.f32 %v920, %v973
        %v987 = vadd.f32 %v921, %v975
        %988 = vset.pattern.permute.xlu0 4
        %989 = vperm.xlu0 %988, %v736
        %v990 = vpop.permute.xlu0 %989
        %992 = vset.pattern.permute.xlu0 4
        %993 = vperm.xlu0 %992, %v737
        %v994 = vpop.permute.xlu0 %993
        %996 = vset.pattern.permute.xlu0 4
        %997 = vperm.xlu0 %996, %v738
        %v998 = vpop.permute.xlu0 %997
        %1000 = vset.pattern.permute.xlu0 4
        %1001 = vperm.xlu0 %1000, %v739
        %v1002 = vpop.permute.xlu0 %1001
        %1004 = vset.pattern.permute.xlu0 4
        %1005 = vperm.xlu0 %1004, %v740
        %v1006 = vpop.permute.xlu0 %1005
        %1008 = vset.pattern.permute.xlu0 4
        %1009 = vperm.xlu0 %1008, %v741
        %v1010 = vpop.permute.xlu0 %1009
        %v1012 = vmul.f32 %v990, %v725
        %v1013 = vmul.f32 %v994, %v727
        %v1014 = vmul.f32 %v998, %v729
        %v1015 = vmul.f32 %v1002, %v731
        %v1016 = vmul.f32 %v1006, %v733
        %v1017 = vmul.f32 %v1010, %v735
        %v1018 = vsel %vm491, %v1012, 0.0
        %v1019 = vsel %vm491, %v1013, 0.0
        %v1020 = vsel %vm491, %v1014, 0.0
        %v1021 = vsel %vm491, %v1015, 0.0
        %v1022 = vsel %vm491, %v1016, 0.0
        %v1023 = vsel %vm491, %v1017, 0.0
        %v1024 = vadd.f32 %v982, %v1018
        %v1025 = vadd.f32 %v983, %v1019
        %v1026 = vadd.f32 %v984, %v1020
        %v1027 = vadd.f32 %v985, %v1021
        %v1028 = vadd.f32 %v986, %v1022
        %v1029 = vadd.f32 %v987, %v1023
        %1030 = vset.pattern.permute.xlu0 5
        %1031 = vperm.xlu0 %1030, %v736
        %v1032 = vpop.permute.xlu0 %1031
        %1034 = vset.pattern.permute.xlu0 5
        %1035 = vperm.xlu0 %1034, %v737
        %v1036 = vpop.permute.xlu0 %1035
        %1038 = vset.pattern.permute.xlu0 5
        %1039 = vperm.xlu0 %1038, %v738
        %v1040 = vpop.permute.xlu0 %1039
        %1042 = vset.pattern.permute.xlu0 5
        %1043 = vperm.xlu0 %1042, %v739
        %v1044 = vpop.permute.xlu0 %1043
        %1046 = vset.pattern.permute.xlu0 5
        %1047 = vperm.xlu0 %1046, %v740
        %v1048 = vpop.permute.xlu0 %1047
        %1050 = vset.pattern.permute.xlu0 5
        %1051 = vperm.xlu0 %1050, %v741
        %v1052 = vpop.permute.xlu0 %1051
        %v1054 = vmul.f32 %v1032, %v725
        %v1055 = vmul.f32 %v1036, %v727
        %v1056 = vmul.f32 %v1040, %v729
        %v1057 = vmul.f32 %v1044, %v731
        %v1058 = vmul.f32 %v1048, %v733
        %v1059 = vmul.f32 %v1052, %v735
        %v1060 = vsel %vm537, %v1054, 0.0
        %v1061 = vsel %vm537, %v1055, 0.0
        %v1062 = vsel %vm537, %v1056, 0.0
        %v1063 = vsel %vm537, %v1057, 0.0
        %v1064 = vsel %vm537, %v1058, 0.0
        %v1065 = vsel %vm537, %v1059, 0.0
        %1072 = vrot.lane.b32.xlu0 %v1060, 96
        %v1073 = vpop.permute.xlu0 %1072
        %1074 = vrot.lane.b32.xlu0 %v1061, 96
        %v1075 = vpop.permute.xlu0 %1074
        %1076 = vrot.lane.b32.xlu0 %v1062, 96
        %v1077 = vpop.permute.xlu0 %1076
        %1078 = vrot.lane.b32.xlu0 %v1063, 96
        %v1079 = vpop.permute.xlu0 %1078
        %1080 = vrot.lane.b32.xlu0 %v1064, 96
        %v1081 = vpop.permute.xlu0 %1080
        %1082 = vrot.lane.b32.xlu0 %v1065, 96
        %v1083 = vpop.permute.xlu0 %1082
        %v1090 = vadd.f32 %v1024, %v1073
        %v1091 = vadd.f32 %v1025, %v1075
        %v1092 = vadd.f32 %v1026, %v1077
        %v1093 = vadd.f32 %v1027, %v1079
        %v1094 = vadd.f32 %v1028, %v1081
        %v1095 = vadd.f32 %v1029, %v1083
        %1096 = vset.pattern.permute.xlu0 6
        %1097 = vperm.xlu0 %1096, %v736
        %v1098 = vpop.permute.xlu0 %1097
        %1100 = vset.pattern.permute.xlu0 6
        %1101 = vperm.xlu0 %1100, %v737
        %v1102 = vpop.permute.xlu0 %1101
        %1104 = vset.pattern.permute.xlu0 6
        %1105 = vperm.xlu0 %1104, %v738
        %v1106 = vpop.permute.xlu0 %1105
        %1108 = vset.pattern.permute.xlu0 6
        %1109 = vperm.xlu0 %1108, %v739
        %v1110 = vpop.permute.xlu0 %1109
        %1112 = vset.pattern.permute.xlu0 6
        %1113 = vperm.xlu0 %1112, %v740
        %v1114 = vpop.permute.xlu0 %1113
        %1116 = vset.pattern.permute.xlu0 6
        %1117 = vperm.xlu0 %1116, %v741
        %v1118 = vpop.permute.xlu0 %1117
        %v1120 = vmul.f32 %v1098, %v725
        %v1121 = vmul.f32 %v1102, %v727
        %v1122 = vmul.f32 %v1106, %v729
        %v1123 = vmul.f32 %v1110, %v731
        %v1124 = vmul.f32 %v1114, %v733
        %v1125 = vmul.f32 %v1118, %v735
        %v1126 = vsel %vm607, %v1120, 0.0
        %v1127 = vsel %vm607, %v1121, 0.0
        %v1128 = vsel %vm607, %v1122, 0.0
        %v1129 = vsel %vm607, %v1123, 0.0
        %v1130 = vsel %vm607, %v1124, 0.0
        %v1131 = vsel %vm607, %v1125, 0.0
        %1138 = vrot.lane.b32.xlu0 %v1126, 64
        %v1139 = vpop.permute.xlu0 %1138
        %1140 = vrot.lane.b32.xlu0 %v1127, 64
        %v1141 = vpop.permute.xlu0 %1140
        %1142 = vrot.lane.b32.xlu0 %v1128, 64
        %v1143 = vpop.permute.xlu0 %1142
        %1144 = vrot.lane.b32.xlu0 %v1129, 64
        %v1145 = vpop.permute.xlu0 %1144
        %1146 = vrot.lane.b32.xlu0 %v1130, 64
        %v1147 = vpop.permute.xlu0 %1146
        %1148 = vrot.lane.b32.xlu0 %v1131, 64
        %v1149 = vpop.permute.xlu0 %1148
        %v1156 = vadd.f32 %v1090, %v1139
        %v1157 = vadd.f32 %v1091, %v1141
        %v1158 = vadd.f32 %v1092, %v1143
        %v1159 = vadd.f32 %v1093, %v1145
        %v1160 = vadd.f32 %v1094, %v1147
        %v1161 = vadd.f32 %v1095, %v1149
        %1162 = vset.pattern.permute.xlu0 7
        %1163 = vperm.xlu0 %1162, %v736
        %v1164 = vpop.permute.xlu0 %1163
        %1166 = vset.pattern.permute.xlu0 7
        %1167 = vperm.xlu0 %1166, %v737
        %v1168 = vpop.permute.xlu0 %1167
        %1170 = vset.pattern.permute.xlu0 7
        %1171 = vperm.xlu0 %1170, %v738
        %v1172 = vpop.permute.xlu0 %1171
        %1174 = vset.pattern.permute.xlu0 7
        %1175 = vperm.xlu0 %1174, %v739
        %v1176 = vpop.permute.xlu0 %1175
        %1178 = vset.pattern.permute.xlu0 7
        %1179 = vperm.xlu0 %1178, %v740
        %v1180 = vpop.permute.xlu0 %1179
        %1182 = vset.pattern.permute.xlu0 7
        %1183 = vperm.xlu0 %1182, %v741
        %v1184 = vpop.permute.xlu0 %1183
        %v1186 = vmul.f32 %v1164, %v725
        %v1187 = vmul.f32 %v1168, %v727
        %v1188 = vmul.f32 %v1172, %v729
        %v1189 = vmul.f32 %v1176, %v731
        %v1190 = vmul.f32 %v1180, %v733
        %v1191 = vmul.f32 %v1184, %v735
        %v1192 = vsel %vm677, %v1186, 0.0
        %v1193 = vsel %vm677, %v1187, 0.0
        %v1194 = vsel %vm677, %v1188, 0.0
        %v1195 = vsel %vm677, %v1189, 0.0
        %v1196 = vsel %vm677, %v1190, 0.0
        %v1197 = vsel %vm677, %v1191, 0.0
        %1204 = vrot.lane.b32.xlu0 %v1192, 32
        %v1205 = vpop.permute.xlu0 %1204
        %1206 = vrot.lane.b32.xlu0 %v1193, 32
        %v1207 = vpop.permute.xlu0 %1206
        %1208 = vrot.lane.b32.xlu0 %v1194, 32
        %v1209 = vpop.permute.xlu0 %1208
        %1210 = vrot.lane.b32.xlu0 %v1195, 32
        %v1211 = vpop.permute.xlu0 %1210
        %1212 = vrot.lane.b32.xlu0 %v1196, 32
        %v1213 = vpop.permute.xlu0 %1212
        %1214 = vrot.lane.b32.xlu0 %v1197, 32
        %v1215 = vpop.permute.xlu0 %1214
        %v1222 = vadd.f32 %v1156, %v1205
        %v1223 = vadd.f32 %v1157, %v1207
        %v1224 = vadd.f32 %v1158, %v1209
        %v1225 = vadd.f32 %v1159, %v1211
        %v1226 = vadd.f32 %v1160, %v1213
        %v1227 = vadd.f32 %v1161, %v1215
        %s1228 = scalar_lea.vmem %s172, 48
        %1229 = vst.msk [vmem:[%s1228] sm:$0xff] %vm714, %v1222
        %1230 = vst.msk [vmem:[%s1228 + $0x8] sm:$0xff] %vm714, %v1223
        %1231 = vst.msk [vmem:[%s1228 + $0x10] sm:$0xff] %vm714, %v1224
        %1232 = vst.msk [vmem:[%s1228 + $0x18] sm:$0xff] %vm714, %v1225
        %1233 = vst.msk [vmem:[%s1228 + $0x20] sm:$0xff] %vm714, %v1226
        %1234 = vst.msk [vmem:[%s1228 + $0x28] sm:$0xff] %vm714, %v1227
        %s1235 = smul.u32 12, %s23
        %p1236 = scmp.lt.s32.totalorder %s1235, 47
        %s1237 = scalar_select %p1236, %s1235, 47
        %s1238 = smul.addr %s1237, 8
        %s1239 = scalar_lea.vmem %s3, %s1238
        // Predicated region
        $region33: #{tpu_custom_call.1} parent=27 // pred_check
          %p1240 = pneg %p88
        $region34: #{tpu_custom_call.1} parent=27 // pred_check_branch
          %1242 = sbr.rel (%p1240) target = $region36
        $region35: #{tpu_custom_call.1} parent=27 // pred_region
          %s1243 = smul.u32 12, %s23
        $region36: #{tpu_custom_call.1} parent=27 // pred_fallthru
          _
      $region28: #{tpu_custom_call.1} parent=5 // pred_fallthru
        _
      %p1244 = scmp.le.s32.totalorder 2, %s18
      // Predicated region
      $region37: #{tpu_custom_call.1} parent=5 // pred_check
        %p1245 = pneg %p1244
      $region38: #{tpu_custom_call.1} parent=5 // pred_check_branch
        %1247 = sbr.rel (%p1245) target = $region40
      $region39: #{tpu_custom_call.1} parent=5 // pred_region
        %s1248 = ssub.s32 %s18, 2
        // Predicated region
        $region41: #{tpu_custom_call.1} parent=39 // pred_check
          %p1249 = pneg %p94
        $region42: #{tpu_custom_call.1} parent=39 // pred_check_branch
          %1251 = sbr.rel (%p1249) target = $region44
        $region43: #{tpu_custom_call.1} parent=39 // pred_region
          %s1252 = smul.u32 12, %s24
          %p1253 = scmp.lt.s32.totalorder %s1252, 47
          %s1254 = scalar_select %p1253, %s1252, 47
          %s1255 = smul.addr %s1254, 8
          %s1256 = scalar_lea.vmem %s3, %s1255
        $region44: #{tpu_custom_call.1} parent=39 // pred_fallthru
          _
      $region40: #{tpu_custom_call.1} parent=5 // pred_fallthru
        _
    $region6: #{tpu_custom_call.1} parent=1 // loop_footer
      %s22 = sadd.s32 1, %s18
    $region7: #{tpu_custom_call.1} parent=1 // loop_footer_branch
      %17 = sbr.rel target = $region3
    $region8: #{tpu_custom_call.1} parent=1 // loop_exit
      _
    %1257 = vsyncpa [#allocation5], 1
    %s1258 = scalar_lea.sflag [#allocation5], 1
    %1259 = vsyncpa %s1258, 1

</llo_original>
